<compile_context>
chip_gen: v5e
topology: v5e:2x2
jax: 0.10.0
libtpu: 0.0.40
codegen_flags: <defaults>
</compile_context>

<pallas_src>
import functools
import math

import jax
import jax.numpy as jnp
from jax import lax
from jax.experimental import pallas as pl
from jax.experimental.pallas import tpu as pltpu


_LANE = 128
_MAX_TILE_ROWS = 512                       # 512-row tiles already hit ~85% of HBM BW
_FALLBACK_VMEM_CAP = 64 * 1024 * 1024      # v7x per-TensorCore capacity (smallest gen)


def _round_up(x, m):
    return ((x + m - 1) // m) * m


def _vmem_capacity_bytes():
    try:
        return int(pltpu.get_tpu_info().vmem_capacity_bytes)
    except Exception:
        return _FALLBACK_VMEM_CAP


def _vmem_limits():
    cap = _vmem_capacity_bytes()
    # ~25% headroom for Mosaic internal scratch / semaphores / spills:
    # 128 MiB (v5e/v6e) -> 96 MiB, 64 MiB (v7x) -> 48 MiB.
    vmem_limit = (cap * 3) // 4
    # Tile-sizing budget: half the scoped limit so the per-row footprint
    # estimate below has slack even if Mosaic materializes an extra temp.
    tile_budget = vmem_limit // 2
    return vmem_limit, tile_budget


def _sublane_min(itemsize):
    # dtype-minimal sublane count: f32 -> 8, bf16 -> 16, int8/fp8 -> 32.
    return max(8, 32 // max(1, int(itemsize)))


def _per_row_vmem_bytes(lane_width, dtype_bytes):
    # Double-buffered input + output tiles (2 bufs each) in the input dtype,
    # plus ~3 tile-sized f32 intermediates (x upcast, x*x, normalized product).
    return 4 * lane_width * dtype_bytes + 12 * lane_width


def _pick_tile_rows(rows, lane_width, dtype_bytes, tile_budget):
    sub = _sublane_min(dtype_bytes)
    per_row = _per_row_vmem_bytes(lane_width, dtype_bytes)
    tile = (tile_budget // per_row) // sub * sub
    tile = max(sub, min(tile, _MAX_TILE_ROWS))
    # Deepen the grid: aim for >= 4 grid steps when there is enough work so each
    # v7x TensorCore gets >= 2 pipelined steps (and v5e/v6e hide the pipeline
    # prologue/epilogue), but keep tiles >= 256 rows where possible so the
    # ~0.35 us per-grid-step overhead stays amortized.
    if rows > 2 * tile:
        quarter = _round_up(-(-rows // 4), sub)
        tile = min(tile, max(quarter, min(256, tile)))
    if tile >= rows:
        tile = rows   # full extent: allowed regardless of sublane multiple
    return tile


# ----------------------------- kernels ---------------------------------------


def _rms_norm_kernel(x_ref, scale_ref, o_ref, *, eps, inv_d):
    # x_ref: (tile_rows, D), scale_ref: (1, D) f32, o_ref: (tile_rows, D)
    x = x_ref[...].astype(jnp.float32)
    var = jnp.sum(x * x, axis=-1, keepdims=True) * inv_d      # mean of squares
    inv = lax.rsqrt(var + eps)
    o_ref[...] = ((x * inv) * scale_ref[...]).astype(o_ref.dtype)


def _rms_norm_kernel_bias(x_ref, scale_ref, shift_ref, o_ref, *, eps, inv_d):
    x = x_ref[...].astype(jnp.float32)
    var = jnp.sum(x * x, axis=-1, keepdims=True) * inv_d
    inv = lax.rsqrt(var + eps)
    o_ref[...] = ((x * inv) * scale_ref[...] + shift_ref[...]).astype(o_ref.dtype)


def _rms_norm_kernel_packed(x_ref, seg_ref, scale_ref, o_ref, *, eps, inv_d, k):
    # x_ref: (tile_rows, k*D) with k original rows packed along the lane axis.
    # seg_ref: (1, k*D) int32 segment ids. Segmented reduction via per-segment
    # masked lane sums: every vector op stays on full-width lane-dense vregs
    # (exact f32 arithmetic, no MXU precision involved); the VPU/XLU cost is
    # hidden under the HBM roofline.
    x = x_ref[...].astype(jnp.float32)
    ss = x * x
    seg = seg_ref[...]
    inv_b = jnp.zeros_like(x)
    for j in range(k):
        m = seg == j
        var_j = jnp.sum(jnp.where(m, ss, 0.0), axis=-1, keepdims=True) * inv_d
        inv_b = jnp.where(m, lax.rsqrt(var_j + eps), inv_b)
    o_ref[...] = ((x * inv_b) * scale_ref[...]).astype(o_ref.dtype)


def _rms_norm_kernel_packed_bias(x_ref, seg_ref, scale_ref, shift_ref, o_ref, *,
                                 eps, inv_d, k):
    x = x_ref[...].astype(jnp.float32)
    ss = x * x
    seg = seg_ref[...]
    inv_b = jnp.zeros_like(x)
    for j in range(k):
        m = seg == j
        var_j = jnp.sum(jnp.where(m, ss, 0.0), axis=-1, keepdims=True) * inv_d
        inv_b = jnp.where(m, lax.rsqrt(var_j + eps), inv_b)
    o_ref[...] = ((x * inv_b) * scale_ref[...] + shift_ref[...]).astype(o_ref.dtype)


# ----------------------------- wrapper ----------------------------------------


def _xla_rms_norm(x, scale, shift, eps):
    xf = x.astype(jnp.float32)
    var = jnp.mean(xf * xf, axis=-1, keepdims=True)
    y = xf * lax.rsqrt(var + eps) * scale.astype(jnp.float32)
    if shift is not None:
        y = y + shift.astype(jnp.float32)
    return y.astype(x.dtype)


def rms_norm(x, scale, shift=None, *, eps=1e-6, tile_rows=None):
    """RMSNorm over the last axis of x (any leading dims), matching the torch module."""
    orig_shape = x.shape
    orig_dtype = x.dtype
    D = orig_shape[-1]
    rows = math.prod(orig_shape[:-1])

    vmem_limit, tile_budget = _vmem_limits()
    itemsize = jnp.dtype(orig_dtype).itemsize
    sub = _sublane_min(itemsize)

    x2 = x.reshape(rows, D)
    scale_f32 = scale.astype(jnp.float32).reshape(D)
    shift_f32 = None if shift is None else shift.astype(jnp.float32).reshape(D)

    # ---- lane packing for small embed dims (D < 128) ------------------------
    k = 1
    if D < _LANE and rows > 1:
        k_max = min(_LANE // D, 16)
        for cand in range(k_max, 1, -1):
            if rows % cand == 0:
                k = cand
                break
    lane_width = k * D
    rows_eff = rows // k

    # Very large embed dim: even a minimal row block would exceed the VMEM
    # budget.  Fall back to plain XLA rather than hitting a Mosaic VMEM failure.
    # TODO(synk): add a D-tiled two-pass Pallas path (partial sum-of-squares
    # accumulated over a second "arbitrary" grid axis) instead of this fallback.
    if sub * _per_row_vmem_bytes(lane_width, itemsize) > tile_budget:
        return _xla_rms_norm(x, scale, shift, eps)

    if tile_rows is None:
        tile_rows = _pick_tile_rows(rows_eff, lane_width, itemsize, tile_budget)
    tile_rows = min(tile_rows, rows_eff)

    # No padding: trailing partial row-block is handled by Pallas.  Rows are
    # independent, so garbage reads in the partial block never contaminate
    # valid rows and their stores are masked.
    grid = (pl.cdiv(rows_eff, tile_rows),)
    inv_d = 1.0 / float(D)

    x_spec = pl.BlockSpec((tile_rows, lane_width), lambda i: (i, 0))
    p_spec = pl.BlockSpec((1, lane_width), lambda i: (0, 0))
    o_spec = pl.BlockSpec((tile_rows, lane_width), lambda i: (i, 0))

    compiler_params = pltpu.CompilerParams(
        dimension_semantics=("parallel",),
        vmem_limit_bytes=int(vmem_limit),
    )

    if k > 1:
        xp = x2.reshape(rows_eff, lane_width)                 # free (contiguous) reshape
        seg_ids = (jnp.arange(lane_width, dtype=jnp.int32) // D).reshape(1, lane_width)
        scale_p = jnp.tile(scale_f32, (k,)).reshape(1, lane_width)
        if shift is None:
            kernel = functools.partial(_rms_norm_kernel_packed, eps=eps, inv_d=inv_d, k=k)
            in_specs = [x_spec, p_spec, p_spec]
            args = (xp, seg_ids, scale_p)
        else:
            shift_p = jnp.tile(shift_f32, (k,)).reshape(1, lane_width)
            kernel = functools.partial(_rms_norm_kernel_packed_bias, eps=eps, inv_d=inv_d, k=k)
            in_specs = [x_spec, p_spec, p_spec, p_spec]
            args = (xp, seg_ids, scale_p, shift_p)
    else:
        scale_r = scale_f32.reshape(1, D)
        if shift is None:
            kernel = functools.partial(_rms_norm_kernel, eps=eps, inv_d=inv_d)
            in_specs = [x_spec, p_spec]
            args = (x2, scale_r)
        else:
            kernel = functools.partial(_rms_norm_kernel_bias, eps=eps, inv_d=inv_d)
            in_specs = [x_spec, p_spec, p_spec]
            args = (x2, scale_r, shift_f32.reshape(1, D))

    out = pl.pallas_call(
        kernel,
        out_shape=jax.ShapeDtypeStruct((rows_eff, lane_width), orig_dtype),
        grid=grid,
        in_specs=in_specs,
        out_specs=o_spec,
        compiler_params=compiler_params,
    )(*args)

    return out.reshape(orig_shape)


def rms_norm_reference(x, scale, shift=None, *, eps=1e-6):
    xf = x.astype(jnp.float32)
    var = jnp.mean(xf * xf, axis=-1, keepdims=True)
    y = xf / jnp.sqrt(var + eps) * scale.astype(jnp.float32)
    if shift is not None:
        y = y + shift.astype(jnp.float32)
    return y.astype(x.dtype)


if __name__ == "__main__":
    key = jax.random.PRNGKey(0)
    k1, k2, k3, k4 = jax.random.split(key, 4)

    # Case 1: module defaults (bias=False), embed_dim=32 -> exercises the
    # lane-packed (D < 128) path.  Parameters match torch init (ones / zeros).
    batch, seq, hidden = 2, 8, 32
    x = jax.random.normal(k1, (batch, seq, hidden), dtype=jnp.float32)
    scale = jnp.ones((hidden,), dtype=jnp.float32)
    out = jax.block_until_ready(rms_norm(x, scale, None, eps=1e-6))
    ref = rms_norm_reference(x, scale, None, eps=1e-6)
    assert out.shape == x.shape and out.dtype == x.dtype
    assert jnp.allclose(out, ref, atol=2e-5, rtol=2e-5), "packed-path mismatch vs reference"

    # Case 2: embed_dim=256 with bias=True -> exercises the unpacked path.
    hidden2 = 256
    x2 = jax.random.normal(k2, (batch, seq, hidden2), dtype=jnp.float32)
    scale2 = 1.0 + 0.1 * jax.random.normal(k3, (hidden2,), dtype=jnp.float32)
    shift2 = 0.05 * jax.random.normal(k4, (hidden2,), dtype=jnp.float32)
    out2 = jax.block_until_ready(rms_norm(x2, scale2, shift2, eps=1e-6))
    ref2 = rms_norm_reference(x2, scale2, shift2, eps=1e-6)
    assert out2.shape == x2.shape and out2.dtype == x2.dtype
    assert jnp.allclose(out2, ref2, atol=2e-5, rtol=2e-5), "unpacked-path mismatch vs reference"

    print("KERNEL_OK")
</pallas_src>

<mosaic_0001>
module attributes {stable_mosaic.version = 11 : i64} {
  func.func @_rms_norm_kernel_packed(%arg0: i32, %arg1: memref<4x128xf32, #tpu.memory_space<vmem>>, %arg2: memref<1x128xi32, #tpu.memory_space<vmem>>, %arg3: memref<1x128xf32, #tpu.memory_space<vmem>>, %arg4: memref<4x128xf32, #tpu.memory_space<vmem>>) attributes {dimension_semantics = [#tpu.dimension_semantics<parallel>], iteration_bounds = array<i64: 1>, scalar_prefetch = 0 : i64, scratch_operands = 0 : i64, tpu.core_type = #tpu.core_type<tc>, window_params = [{transform_indices = @transform_0, window_bounds = array<i64: 4, 128>}, {pipeline_mode = #tpu.pipeline_mode<synchronous>, transform_indices = @transform_1, window_bounds = array<i64: 1, 128>}, {pipeline_mode = #tpu.pipeline_mode<synchronous>, transform_indices = @transform_2, window_bounds = array<i64: 1, 128>}, {transform_indices = @transform_3, window_bounds = array<i64: 4, 128>}]} {
    %c0 = arith.constant 0 : index
    %c0_0 = arith.constant 0 : index
    %0 = vector.load %arg1[%c0, %c0_0] : memref<4x128xf32, #tpu.memory_space<vmem>>, vector<4x128xf32>
    %1 = arith.mulf %0, %0 : vector<4x128xf32>
    %c0_1 = arith.constant 0 : index
    %c0_2 = arith.constant 0 : index
    %2 = vector.load %arg2[%c0_1, %c0_2] : memref<1x128xi32, #tpu.memory_space<vmem>>, vector<1x128xi32>
    %cst = arith.constant 0.000000e+00 : f32
    %3 = vector.broadcast %cst : f32 to vector<4x128xf32>
    %c0_i32 = arith.constant 0 : i32
    %4 = vector.broadcast %c0_i32 : i32 to vector<1x128xi32>
    %5 = arith.cmpi eq, %2, %4 : vector<1x128xi32>
    %cst_3 = arith.constant 0.000000e+00 : f32
    %6 = vector.shape_cast %5 : vector<1x128xi1> to vector<1x128xi1>
    %7 = vector.broadcast %6 : vector<1x128xi1> to vector<4x128xi1>
    %8 = vector.broadcast %cst_3 : f32 to vector<4x128xf32>
    %9 = arith.select %7, %1, %8 : vector<4x128xi1>, vector<4x128xf32>
    %cst_4 = arith.constant dense<0.000000e+00> : vector<4xf32>
    %10 = vector.multi_reduction <add>, %9, %cst_4 [1] : vector<4x128xf32> to vector<4xf32>
    %11 = vector.shape_cast %10 : vector<4xf32> to vector<4x1xf32>
    %cst_5 = arith.constant 3.125000e-02 : f32
    %12 = vector.broadcast %cst_5 : f32 to vector<4x1xf32>
    %13 = arith.mulf %11, %12 : vector<4x1xf32>
    %cst_6 = arith.constant 9.99999997E-7 : f32
    %14 = vector.broadcast %cst_6 : f32 to vector<4x1xf32>
    %15 = arith.addf %13, %14 : vector<4x1xf32>
    %16 = math.rsqrt %15 : vector<4x1xf32>
    %17 = vector.shape_cast %5 : vector<1x128xi1> to vector<1x128xi1>
    %18 = vector.broadcast %17 : vector<1x128xi1> to vector<4x128xi1>
    %19 = vector.shape_cast %16 : vector<4x1xf32> to vector<4x1xf32>
    %20 = vector.broadcast %19 : vector<4x1xf32> to vector<4x128xf32>
    %21 = arith.select %18, %20, %3 : vector<4x128xi1>, vector<4x128xf32>
    %c1_i32 = arith.constant 1 : i32
    %22 = vector.broadcast %c1_i32 : i32 to vector<1x128xi32>
    %23 = arith.cmpi eq, %2, %22 : vector<1x128xi32>
    %cst_7 = arith.constant 0.000000e+00 : f32
    %24 = vector.shape_cast %23 : vector<1x128xi1> to vector<1x128xi1>
    %25 = vector.broadcast %24 : vector<1x128xi1> to vector<4x128xi1>
    %26 = vector.broadcast %cst_7 : f32 to vector<4x128xf32>
    %27 = arith.select %25, %1, %26 : vector<4x128xi1>, vector<4x128xf32>
    %cst_8 = arith.constant dense<0.000000e+00> : vector<4xf32>
    %28 = vector.multi_reduction <add>, %27, %cst_8 [1] : vector<4x128xf32> to vector<4xf32>
    %29 = vector.shape_cast %28 : vector<4xf32> to vector<4x1xf32>
    %cst_9 = arith.constant 3.125000e-02 : f32
    %30 = vector.broadcast %cst_9 : f32 to vector<4x1xf32>
    %31 = arith.mulf %29, %30 : vector<4x1xf32>
    %cst_10 = arith.constant 9.99999997E-7 : f32
    %32 = vector.broadcast %cst_10 : f32 to vector<4x1xf32>
    %33 = arith.addf %31, %32 : vector<4x1xf32>
    %34 = math.rsqrt %33 : vector<4x1xf32>
    %35 = vector.shape_cast %23 : vector<1x128xi1> to vector<1x128xi1>
    %36 = vector.broadcast %35 : vector<1x128xi1> to vector<4x128xi1>
    %37 = vector.shape_cast %34 : vector<4x1xf32> to vector<4x1xf32>
    %38 = vector.broadcast %37 : vector<4x1xf32> to vector<4x128xf32>
    %39 = arith.select %36, %38, %21 : vector<4x128xi1>, vector<4x128xf32>
    %c2_i32 = arith.constant 2 : i32
    %40 = vector.broadcast %c2_i32 : i32 to vector<1x128xi32>
    %41 = arith.cmpi eq, %2, %40 : vector<1x128xi32>
    %cst_11 = arith.constant 0.000000e+00 : f32
    %42 = vector.shape_cast %41 : vector<1x128xi1> to vector<1x128xi1>
    %43 = vector.broadcast %42 : vector<1x128xi1> to vector<4x128xi1>
    %44 = vector.broadcast %cst_11 : f32 to vector<4x128xf32>
    %45 = arith.select %43, %1, %44 : vector<4x128xi1>, vector<4x128xf32>
    %cst_12 = arith.constant dense<0.000000e+00> : vector<4xf32>
    %46 = vector.multi_reduction <add>, %45, %cst_12 [1] : vector<4x128xf32> to vector<4xf32>
    %47 = vector.shape_cast %46 : vector<4xf32> to vector<4x1xf32>
    %cst_13 = arith.constant 3.125000e-02 : f32
    %48 = vector.broadcast %cst_13 : f32 to vector<4x1xf32>
    %49 = arith.mulf %47, %48 : vector<4x1xf32>
    %cst_14 = arith.constant 9.99999997E-7 : f32
    %50 = vector.broadcast %cst_14 : f32 to vector<4x1xf32>
    %51 = arith.addf %49, %50 : vector<4x1xf32>
    %52 = math.rsqrt %51 : vector<4x1xf32>
    %53 = vector.shape_cast %41 : vector<1x128xi1> to vector<1x128xi1>
    %54 = vector.broadcast %53 : vector<1x128xi1> to vector<4x128xi1>
    %55 = vector.shape_cast %52 : vector<4x1xf32> to vector<4x1xf32>
    %56 = vector.broadcast %55 : vector<4x1xf32> to vector<4x128xf32>
    %57 = arith.select %54, %56, %39 : vector<4x128xi1>, vector<4x128xf32>
    %c3_i32 = arith.constant 3 : i32
    %58 = vector.broadcast %c3_i32 : i32 to vector<1x128xi32>
    %59 = arith.cmpi eq, %2, %58 : vector<1x128xi32>
    %cst_15 = arith.constant 0.000000e+00 : f32
    %60 = vector.shape_cast %59 : vector<1x128xi1> to vector<1x128xi1>
    %61 = vector.broadcast %60 : vector<1x128xi1> to vector<4x128xi1>
    %62 = vector.broadcast %cst_15 : f32 to vector<4x128xf32>
    %63 = arith.select %61, %1, %62 : vector<4x128xi1>, vector<4x128xf32>
    %cst_16 = arith.constant dense<0.000000e+00> : vector<4xf32>
    %64 = vector.multi_reduction <add>, %63, %cst_16 [1] : vector<4x128xf32> to vector<4xf32>
    %65 = vector.shape_cast %64 : vector<4xf32> to vector<4x1xf32>
    %cst_17 = arith.constant 3.125000e-02 : f32
    %66 = vector.broadcast %cst_17 : f32 to vector<4x1xf32>
    %67 = arith.mulf %65, %66 : vector<4x1xf32>
    %cst_18 = arith.constant 9.99999997E-7 : f32
    %68 = vector.broadcast %cst_18 : f32 to vector<4x1xf32>
    %69 = arith.addf %67, %68 : vector<4x1xf32>
    %70 = math.rsqrt %69 : vector<4x1xf32>
    %71 = vector.shape_cast %59 : vector<1x128xi1> to vector<1x128xi1>
    %72 = vector.broadcast %71 : vector<1x128xi1> to vector<4x128xi1>
    %73 = vector.shape_cast %70 : vector<4x1xf32> to vector<4x1xf32>
    %74 = vector.broadcast %73 : vector<4x1xf32> to vector<4x128xf32>
    %75 = arith.select %72, %74, %57 : vector<4x128xi1>, vector<4x128xf32>
    %76 = arith.mulf %0, %75 : vector<4x128xf32>
    %c0_19 = arith.constant 0 : index
    %c0_20 = arith.constant 0 : index
    %77 = vector.load %arg3[%c0_19, %c0_20] : memref<1x128xf32, #tpu.memory_space<vmem>>, vector<1x128xf32>
    %78 = vector.broadcast %77 : vector<1x128xf32> to vector<4x128xf32>
    %79 = arith.mulf %76, %78 : vector<4x128xf32>
    %c0_21 = arith.constant 0 : index
    %c0_22 = arith.constant 0 : index
    %80 = vector.load %arg4[%c0_21, %c0_22] : memref<4x128xf32, #tpu.memory_space<vmem>>, vector<4x128xf32>
    tpu.vector_store %arg4[%c0_21, %c0_22], %79 {strides = array<i32>} : memref<4x128xf32, #tpu.memory_space<vmem>>, vector<4x128xf32>,
    return
  }
  func.func @transform_0(%arg0: i32) -> (i32, i32) {
    %c0_i32 = arith.constant 0 : i32
    %c0_i32_0 = arith.constant 0 : i32
    return %arg0, %c0_i32 : i32, i32
  }
  func.func @transform_1(%arg0: i32) -> (i32, i32) {
    %c0_i32 = arith.constant 0 : i32
    %c0_i32_0 = arith.constant 0 : i32
    %c0_i32_1 = arith.constant 0 : i32
    return %c0_i32, %c0_i32_0 : i32, i32
  }
  func.func @transform_2(%arg0: i32) -> (i32, i32) {
    %c0_i32 = arith.constant 0 : i32
    %c0_i32_0 = arith.constant 0 : i32
    %c0_i32_1 = arith.constant 0 : i32
    return %c0_i32, %c0_i32_0 : i32, i32
  }
  func.func @transform_3(%arg0: i32) -> (i32, i32) {
    %c0_i32 = arith.constant 0 : i32
    %c0_i32_0 = arith.constant 0 : i32
    return %arg0, %c0_i32 : i32, i32
  }
}

</mosaic_0001>

<llo_original>
// kernel: tpu_custom_call.1
$region0: #{tpu_custom_call.1}
  #allocation0 [shape = 'u32[]', space=smem, size = 0x4, offset = 0x4, fixed_abs, tag = 'smem constant byte address 0x4 - core index']
  #allocation1 [shape = 'u32[72,128]{1,0:T(1,128)}', space=vmem, size = 0x9000, scoped, tag = 'internal scratch']
  %s0 = inlined_call_operand.hbm [shape: f32[4,128], index: 0, kind: input, shape index: {}]
  %s1 = inlined_call_operand.hbm [shape: s32[1,128], index: 1, kind: input, shape index: {}]
  %s2 = inlined_call_operand.vmem [shape: f32[1,128], index: 2, kind: input, shape index: {}]
  %s3 = inlined_call_operand.hbm [shape: f32[4,128], index: 3, kind: output, shape index: {}]
  %s4 = sld [smem:[#allocation0]]
  $region30: #{tpu_custom_call.1} parent=0
    _
  %s6 = ssub.s32 1, %s4
  %s7 = scalar_select 0, %s6, %s4
  $region1: #{tpu_custom_call.1} parent=0
    #allocation2 [shape = 'u8[2048]{0}', space=vmem, size = 0x800, scoped, tag = 'input window, operand 0, single buffered']
    #allocation3 [shape = 's32[1]{0}', space=sflag, size = 0x4, scoped, tag = 'scoped memory for tpu_custom_call.1']
    #allocation4 [shape = 's32[1]{0}', space=sflag, size = 0x4, scoped, tag = 'scoped memory for tpu_custom_call.1']
    #allocation5 [shape = 'u8[512]{0}', space=vmem, size = 0x400, scoped, tag = 'input window, operand 1, single buffered']
    #allocation6 [shape = 's32[1]{0}', space=sflag, size = 0x4, scoped, tag = 'scoped memory for tpu_custom_call.1']
    #allocation7 [shape = 'u8[2048]{0}', space=vmem, size = 0x800, scoped, tag = 'output window, operand 0, single buffered']
    %8 = vsyncpa [#allocation3], 0
    %9 = vsyncpa [#allocation6], 0
    %10 = vsyncpa [#allocation4], 0
    // Predicated region
    $region2: #{tpu_custom_call.1} parent=1 // pred_check
      _
    $region3: #{tpu_custom_call.1} parent=1 // pred_check_branch
      %12 = sbr.rel (0) target = $region5
    $region4: #{tpu_custom_call.1} parent=1 // pred_region
      %14 = vsyncadd [#allocation3], 0
      %s16 = sshll.u32 %s0, 4
      %s17 = int_to_ptr.hbm [resolvable:$true] %s16
      %s18 = sshll.u32 [#allocation2], 4
      %s19 = int_to_ptr.vmem [resolvable:$true] %s18
      %21 = dma.hbm_to_vmem [thread:$0]  %s17, 64, %s19, [#allocation3]
    $region5: #{tpu_custom_call.1} parent=1 // pred_fallthru
      _
    // Predicated region
    $region6: #{tpu_custom_call.1} parent=1 // pred_check
      _
    $region7: #{tpu_custom_call.1} parent=1 // pred_check_branch
      %23 = sbr.rel (0) target = $region9
    $region8: #{tpu_custom_call.1} parent=1 // pred_region
      %25 = vsyncadd [#allocation6], 0
      %s27 = sshll.u32 %s1, 4
      %s28 = int_to_ptr.hbm [resolvable:$true] %s27
      %s29 = sshll.u32 [#allocation5], 4
      %s30 = int_to_ptr.vmem [resolvable:$true] %s29
      %32 = dma.hbm_to_vmem [thread:$0]  %s28, 16, %s30, [#allocation6]
    $region9: #{tpu_custom_call.1} parent=1 // pred_fallthru
      _
    // Predicated region
    $region10: #{tpu_custom_call.1} parent=1 // pred_check
      _
    $region11: #{tpu_custom_call.1} parent=1 // pred_check_branch
      %34 = sbr.rel (0) target = $region13
    $region12: #{tpu_custom_call.1} parent=1 // pred_region
      _
    $region13: #{tpu_custom_call.1} parent=1 // pred_fallthru
      _
    // Predicated region
    $region14: #{tpu_custom_call.1} parent=1 // pred_check
      _
    $region15: #{tpu_custom_call.1} parent=1 // pred_check_branch
      %36 = sbr.rel (0) target = $region17
    $region16: #{tpu_custom_call.1} parent=1 // pred_region
      %38 = dma.done [#allocation3], 64
    $region17: #{tpu_custom_call.1} parent=1 // pred_fallthru
      _
    // Predicated region
    $region18: #{tpu_custom_call.1} parent=1 // pred_check
      _
    $region19: #{tpu_custom_call.1} parent=1 // pred_check_branch
      %40 = sbr.rel (0) target = $region21
    $region20: #{tpu_custom_call.1} parent=1 // pred_region
      %42 = dma.done [#allocation6], 16
    $region21: #{tpu_custom_call.1} parent=1 // pred_fallthru
      _
    %v43 = vld [vmem:[#allocation2] sm:$0xf]
    %v44 = vmul.f32 %v43, %v43
    %v45 = vld [vmem:[#allocation5] sm:$0x1]
    %vm46 = vcmp.eq.s32.totalorder %v45, 0
    %v47 = vsel %vm46, 1, 0
    %v48 = vperm.slane %v47, 0
    %vm49 = vcmp.eq.s32.totalorder %v48, 1
    %v50 = vsel %vm49, %v44, 0.0
    %vm51 = vcmask 1043456
    %v52 = vsel %vm51, %v50, 0.0
    %53 = vadd.xlane.f32.xlu0 %v52
    %v54 = vpop.xlane.xlu0 %53
    %v55 = vmul.f32 %v54, 0.03125
    %v56 = vadd.f32 %v55, 1e-06
    %v57 = vrsqrt.pop %v56
    %v58 = vmul.f32 %v57, %v56
    %v59 = vmul.f32 %v58, %v57
    %v60 = vmul.f32 0.5, %v59
    %v61 = vsub.f32 1.5, %v60
    %v62 = vmul.f32 %v57, %v61
    %vm63 = vweird.f32 %v56
    %vm64 = vweird.f32 %v57
    %vm65 = vmor %vm63, %vm64
    %v66 = vsel %vm65, %v57, %v62
    %v67 = vsel %vm49, %v66, 0.0
    %vm68 = vcmp.eq.s32.totalorder %v45, 1
    %v69 = vsel %vm68, 1, 0
    %v70 = vperm.slane %v69, 0
    %vm71 = vcmp.eq.s32.totalorder %v70, 1
    %v72 = vsel %vm71, %v44, 0.0
    %v73 = vsel %vm51, %v72, 0.0
    %74 = vadd.xlane.f32.xlu0 %v73
    %v75 = vpop.xlane.xlu0 %74
    %v76 = vmul.f32 %v75, 0.03125
    %v77 = vadd.f32 %v76, 1e-06
    %v78 = vrsqrt.pop %v77
    %v79 = vmul.f32 %v78, %v77
    %v80 = vmul.f32 %v79, %v78
    %v81 = vmul.f32 0.5, %v80
    %v82 = vsub.f32 1.5, %v81
    %v83 = vmul.f32 %v78, %v82
    %vm84 = vweird.f32 %v77
    %vm85 = vweird.f32 %v78
    %vm86 = vmor %vm84, %vm85
    %v87 = vsel %vm86, %v78, %v83
    %v88 = vsel %vm71, %v87, %v67
    %vm89 = vcmp.eq.s32.totalorder %v45, 2
    %v90 = vsel %vm89, 1, 0
    %v91 = vperm.slane %v90, 0
    %vm92 = vcmp.eq.s32.totalorder %v91, 1
    %v93 = vsel %vm92, %v44, 0.0
    %v94 = vsel %vm51, %v93, 0.0
    %95 = vadd.xlane.f32.xlu0 %v94
    %v96 = vpop.xlane.xlu0 %95
    %v97 = vmul.f32 %v96, 0.03125
    %v98 = vadd.f32 %v97, 1e-06
    %v99 = vrsqrt.pop %v98
    %v100 = vmul.f32 %v99, %v98
    %v101 = vmul.f32 %v100, %v99
    %v102 = vmul.f32 0.5, %v101
    %v103 = vsub.f32 1.5, %v102
    %v104 = vmul.f32 %v99, %v103
    %vm105 = vweird.f32 %v98
    %vm106 = vweird.f32 %v99
    %vm107 = vmor %vm105, %vm106
    %v108 = vsel %vm107, %v99, %v104
    %v109 = vsel %vm92, %v108, %v88
    %vm110 = vcmp.eq.s32.totalorder %v45, 3
    %v111 = vsel %vm110, 1, 0
    %v112 = vperm.slane %v111, 0
    %vm113 = vcmp.eq.s32.totalorder %v112, 1
    %v114 = vsel %vm113, %v44, 0.0
    %v115 = vsel %vm51, %v114, 0.0
    %116 = vadd.xlane.f32.xlu0 %v115
    %v117 = vpop.xlane.xlu0 %116
    %v118 = vmul.f32 %v117, 0.03125
    %v119 = vadd.f32 %v118, 1e-06
    %v120 = vrsqrt.pop %v119
    %v121 = vmul.f32 %v120, %v119
    %v122 = vmul.f32 %v121, %v120
    %v123 = vmul.f32 0.5, %v122
    %v124 = vsub.f32 1.5, %v123
    %v125 = vmul.f32 %v120, %v124
    %vm126 = vweird.f32 %v119
    %vm127 = vweird.f32 %v120
    %vm128 = vmor %vm126, %vm127
    %v129 = vsel %vm128, %v120, %v125
    %v130 = vsel %vm113, %v129, %v109
    %v131 = vmul.f32 %v43, %v130
    %v132 = vld [vmem:[%s2] sm:$0x1]
    %v134 = vperm.slane %v132, 0
    %v136 = vmul.f32 %v131, %v134
    %137 = vst [vmem:[#allocation7] sm:$0xf] %v136
    // Predicated region
    $region22: #{tpu_custom_call.1} parent=1 // pred_check
      _
    $region23: #{tpu_custom_call.1} parent=1 // pred_check_branch
      %139 = sbr.rel (0) target = $region25
    $region24: #{tpu_custom_call.1} parent=1 // pred_region
      %141 = vsyncadd [#allocation4], 0
      %s143 = sshll.u32 [#allocation7], 4
      %s144 = int_to_ptr.vmem [resolvable:$true] %s143
      %s145 = sshll.u32 %s3, 4
      %s146 = int_to_ptr.hbm [resolvable:$true] %s145
      %148 = dma.vmem_to_hbm [thread:$0]  %s144, 64, %s146, [#allocation4]
    $region25: #{tpu_custom_call.1} parent=1 // pred_fallthru
      _
    // Predicated region
    $region26: #{tpu_custom_call.1} parent=1 // pred_check
      _
    $region27: #{tpu_custom_call.1} parent=1 // pred_check_branch
      %150 = sbr.rel (0) target = $region29
    $region28: #{tpu_custom_call.1} parent=1 // pred_region
      %152 = dma.done [#allocation4], 64
    $region29: #{tpu_custom_call.1} parent=1 // pred_fallthru
      _
    %153 = vsyncpa [#allocation3], 1
    %154 = vsyncpa [#allocation6], 1
    %155 = vsyncpa [#allocation4], 1

</llo_original>
